<compile_context>
chip_gen: v5e
topology: v5e:2x2
jax: 0.10.0
libtpu: 0.0.40
codegen_flags: <defaults>
</compile_context>

<pallas_src>
import functools

import jax
import jax.numpy as jnp
from jax.experimental import pallas as pl
from jax.experimental.pallas import tpu as pltpu


# -----------------------------------------------------------------------------
# Pallas kernel: grid = (row tiles, K tiles over the N contraction dim).
# -----------------------------------------------------------------------------
def _gcaps_kernel(num_gfc_layers, adj_ref, xp_ref, xrow_ref, *refs):
    """refs = [W_0, b_0, ..., W_{L-1}, b_{L-1}, out_ref, acc_ref].

    adj_ref  : (TM, TK)  int8  adjacency tile (0/1), upcast to bf16 in-kernel
    xp_ref   : (TK, S*F) bf16  per-stat powers of x_in, streamed over K
    xrow_ref : (TM, S*F) f32   this row tile's powers (GIN self term, kept f32)
    W_l, b_l :            f32  block-diagonal stacked per-stat weights/biases
    out_ref  : (TM, PW)  f32   lane-dense (128-padded) output tile
    acc_ref  : (TM, S*F) f32   neighbor-sum accumulator (scratch)
    """
    acc_ref = refs[-1]
    out_ref = refs[-2]
    wb = refs[:-2]

    k = pl.program_id(1)
    nk = pl.num_programs(1)

    @pl.when(k == 0)
    def _():
        acc_ref[...] = jnp.zeros_like(acc_ref)

    # Batched GIN 'sum' neighbor aggregation for all stats at once:
    #   acc[:, s*F:(s+1)*F] += A(tile rows, K cols) @ xp_s(K rows)
    # int8 {0,1} -> bf16 is exact; bf16 x bf16 dot with f32 accumulation runs
    # the MXU at native rate and the upcast is free VPU filler under the
    # HBM-bandwidth bound on the adjacency stream.
    adj = adj_ref[...].astype(jnp.bfloat16)
    acc_ref[...] += jnp.dot(adj, xp_ref[...], preferred_element_type=jnp.float32)

    @pl.when(k == nk - 1)
    def _():
        # GIN eps = 0:  agg = x(self, f32) + sum_neighbors
        h = acc_ref[...] + xrow_ref[...]
        # Per-stat MLPs as block-diagonal matmuls (+ bias, ReLU); the padded
        # columns of the final layer stay exactly 0 through ReLU.
        for l in range(num_gfc_layers):
            w = wb[2 * l][...]
            b = wb[2 * l + 1][...]
            h = jnp.dot(h, w, preferred_element_type=jnp.float32) + b
            h = jnp.maximum(h, 0.0)
        out_ref[...] = h.astype(out_ref.dtype)   # single lane-dense store / row tile


def _round_up(v, m):
    return ((v + m - 1) // m) * m


def _vmem_limit_and_budget():
    """Generation-aware VMEM limit (bytes) and tiling budget (bytes)."""
    try:
        cap = int(pltpu.get_tpu_info().vmem_capacity_bytes)
    except Exception:
        cap = 64 * 1024 * 1024              # conservative: v7x per-core VMEM
    limit = min(int(cap * 0.80), cap - (4 << 20))
    limit = max(limit, 32 << 20)
    budget = limit - (6 << 20)              # headroom for compiler temps / MLP intermediates
    return limit, budget


def _choose_tiles(n_pad, sf, pad_w, w_bytes, budget):
    """Pick (TM, TK) from the VMEM budget.  TM multiple of 32 (int8 sublane
    packing), TK multiple of 128 (or full N).  Prefer big TM (amortize the
    ~0.35 us/step overhead, taller MXU M, megacore sharding on the row axis),
    then big TK (fewer accumulator passes)."""
    def need(tm, tk):
        return (2 * tm * tk * 1            # adj int8, double-buffered
                + 2 * tk * sf * 2          # xp bf16, double-buffered
                + 2 * tm * sf * 4          # xp row tile f32, double-buffered
                + 2 * tm * pad_w * 4       # output f32, double-buffered
                + tm * sf * 4              # accumulator scratch
                + 2 * tm * pad_w * 4       # rough bound on MLP intermediates
                + 2 * w_bytes)             # stacked weights (double-buffered)

    tm_cands = [t for t in (1024, 512, 256, 128, 64, 32)
                if t <= n_pad and n_pad % t == 0]
    tk_cands = [n_pad] + [t for t in (8192, 4096, 2048, 1024, 512, 256, 128)
                          if t < n_pad and n_pad % t == 0]
    # Prefer >= 2 row tiles so the adjacency DMA pipelines / megacore shards.
    for min_rows in (2, 1):
        for tm in tm_cands:
            if n_pad // tm < min_rows:
                continue
            for tk in tk_cands:
                if need(tm, tk) <= budget:
                    return tm, tk
    raise ValueError("no feasible (TM, TK) tiling for the VMEM budget")


# -----------------------------------------------------------------------------
# One-time per-graph preprocessing (analogue of DGL's cached graph structure).
# -----------------------------------------------------------------------------
def prepare_graph(adj):
    """Dense 0/1 f32 adjacency -> (int8 adjacency, in_degrees), zero-padded to a
    tileable node count.  This is the only O(N^2) pass outside the kernel and it
    runs ONCE per graph (DGL keeps in_degrees / the compact graph for free), so
    the per-call wrapper never touches O(N^2) data."""
    n = adj.shape[0]
    n_pad = _round_up(n, 128)
    deg = jnp.sum(adj, axis=1)                         # in_degree(i) = sum_j A[i, j]
    adj_i8 = adj.astype(jnp.int8)                      # exact for {0, 1}
    if n_pad != n:
        adj_i8 = jnp.pad(adj_i8, ((0, n_pad - n), (0, n_pad - n)))
        deg = jnp.pad(deg, (0, n_pad - n))
    return adj_i8, deg, n


# -----------------------------------------------------------------------------
# Per-call wrapper.
# -----------------------------------------------------------------------------
def gcaps_conv_pallas(adj_i8, in_degrees, x, params, *, out_feats, num_stats_out,
                      num_gfc_layers, tile_m=None, tile_k=None):
    assert num_gfc_layers >= 1
    n, f = x.shape
    n_pad = adj_i8.shape[0]
    s, o = num_stats_out, out_feats
    sf = s * f

    # --- cheap O(N*S*F) preprocessing in plain JAX ---------------------------
    if n_pad != n:
        x = jnp.pad(x, ((0, n_pad - n), (0, 0)))
    norm = jax.lax.rsqrt(jnp.maximum(in_degrees.astype(jnp.float32), 1.0))[:, None]
    x_in = x.astype(jnp.float32) * norm
    powers = [x_in]
    for _ in range(1, s):
        powers.append(powers[-1] * x_in)               # same multiply order as the module
    xp = jnp.concatenate(powers, axis=-1)              # (N_pad, S*F) f32 (self term)
    xp_bf16 = xp.astype(jnp.bfloat16)                  # bf16 RHS for the MXU aggregation

    # --- stack per-stat MLPs into block-diagonal weights ----------------------
    # TODO(synk): for num_stats_out >~ 4 switch to a batched einsum
    # ('tsi,sio->tso') per layer instead of block-diag (S-fold zero FLOPs/VMEM).
    out_width = s * o
    pad_width = _round_up(out_width, 128)              # lane-dense output store
    flat = []
    for l in range(num_gfc_layers):
        in_ps = f if l == 0 else o
        out_total = pad_width if l == num_gfc_layers - 1 else s * o
        w_l = jnp.zeros((s * in_ps, out_total), jnp.float32)
        b_l = jnp.zeros((1, out_total), jnp.float32)
        for st in range(s):
            w, b = params[st][l]                       # (in_ps, o), (1, o)
            w_l = w_l.at[st * in_ps:(st + 1) * in_ps, st * o:(st + 1) * o].set(w)
            b_l = b_l.at[:, st * o:(st + 1) * o].set(b)
        flat += [w_l, b_l]
    w_bytes = sum(int(p.size) * 4 for p in flat)

    # --- VMEM-budget-aware tiling ---------------------------------------------
    vmem_limit, budget = _vmem_limit_and_budget()
    tm_auto, tk_auto = _choose_tiles(n_pad, sf, pad_width, w_bytes, budget)
    tm = tile_m if tile_m is not None else tm_auto
    tk = tile_k if tile_k is not None else tk_auto
    assert n_pad % tm == 0 and n_pad % tk == 0, "tiles must divide padded N"
    assert tm % 32 == 0, "TM must be a multiple of 32 (int8 sublane packing)"
    grid = (n_pad // tm, n_pad // tk)

    in_specs = (
        [pl.BlockSpec((tm, tk), lambda i, k: (i, k)),       # adjacency tile (int8, streamed)
         pl.BlockSpec((tk, sf), lambda i, k: (k, 0)),       # xp powers (bf16, streamed over K)
         pl.BlockSpec((tm, sf), lambda i, k: (i, 0))]       # xp row tile (f32 self term)
        + [pl.BlockSpec(p.shape, lambda i, k: (0, 0)) for p in flat]
    )
    out_spec = pl.BlockSpec((tm, pad_width), lambda i, k: (i, 0))

    kernel = functools.partial(_gcaps_kernel, num_gfc_layers)
    out_padded = pl.pallas_call(
        kernel,
        grid=grid,
        in_specs=in_specs,
        out_specs=out_spec,
        out_shape=jax.ShapeDtypeStruct((n_pad, pad_width), jnp.float32),
        scratch_shapes=[pltpu.VMEM((tm, sf), jnp.float32)],   # f32 neighbor-sum accumulator
        compiler_params=pltpu.CompilerParams(
            dimension_semantics=("parallel", "arbitrary"),    # rows parallel, K reduction
            vmem_limit_bytes=int(vmem_limit)),
    )(adj_i8, xp_bf16, xp, *flat)

    # Output traffic is O(N * S*out) — second-order vs the N^2 adjacency stream;
    # a consumer that can accept the 128-padded buffer can skip this slice.
    return out_padded[:n, :out_width]


# -----------------------------------------------------------------------------
# Pure-JAX reference (mirrors the PyTorch forward) for a correctness check.
# -----------------------------------------------------------------------------
def gcaps_conv_ref(adj, x, params, *, out_feats, num_stats_out, num_gfc_layers):
    hp = jax.lax.Precision.HIGHEST
    deg = jnp.sum(adj, axis=1, keepdims=True)
    norm = jnp.power(jnp.maximum(deg, 1.0), -0.5)
    x_in = x * norm
    xp = x_in
    outs = []
    for st in range(num_stats_out):
        h = xp + jnp.dot(adj, xp, precision=hp)
        for l in range(num_gfc_layers):
            w, b = params[st][l]
            h = jnp.maximum(jnp.dot(h, w, precision=hp) + b, 0.0)
        outs.append(h)
        xp = xp * x_in
    return jnp.concatenate(outs, axis=-1)


# -----------------------------------------------------------------------------
# Deterministic parameter construction.
# -----------------------------------------------------------------------------
def make_params(key, in_dim, out_feats, num_stats_out, num_gfc_layers):
    """Xavier-normal (gain=sqrt(2), matching calculate_gain('relu')) weights,
    zero biases.  Weights stored as (in, out) so the kernel does h @ W + b."""
    gain = jnp.sqrt(2.0)
    params = []
    for _s in range(num_stats_out):
        layers = []
        cur_in = in_dim
        for _l in range(num_gfc_layers):
            key, k = jax.random.split(key)
            std = gain * jnp.sqrt(2.0 / (cur_in + out_feats))
            w = std * jax.random.normal(k, (cur_in, out_feats), dtype=jnp.float32)
            b = jnp.zeros((1, out_feats), dtype=jnp.float32)
            layers.append((w, b))
            cur_in = out_feats
        params.append(layers)
    return params


if __name__ == "__main__":
    # Small synthetic shapes consistent with the module.
    N = 256                # number of graph nodes
    IN_FEATS = 8
    NUM_STATS_IN = 1
    OUT_FEATS = 16
    NUM_STATS_OUT = 2
    NUM_GFC_LAYERS = 2
    F = IN_FEATS * NUM_STATS_IN

    key = jax.random.PRNGKey(0)
    k_adj, k_x, k_p = jax.random.split(key, 3)

    # Random symmetric adjacency (no self loops), A[i, j] = 1 iff edge j -> i.
    a = (jax.random.uniform(k_adj, (N, N)) < 0.3).astype(jnp.float32)
    adj = jnp.maximum(a, a.T) * (1.0 - jnp.eye(N, dtype=jnp.float32))

    x = jax.random.normal(k_x, (N, F), dtype=jnp.float32)
    params = make_params(k_p, F, OUT_FEATS, NUM_STATS_OUT, NUM_GFC_LAYERS)

    # One-time graph prep (compact int8 adjacency + in-degrees).
    adj_i8, deg, _ = prepare_graph(adj)

    ref = gcaps_conv_ref(
        adj, x, params,
        out_feats=OUT_FEATS, num_stats_out=NUM_STATS_OUT,
        num_gfc_layers=NUM_GFC_LAYERS)

    # Run 1: auto, VMEM-budget-aware tiling (TM=128, TK=256 at these shapes).
    out = gcaps_conv_pallas(
        adj_i8, deg, x, params,
        out_feats=OUT_FEATS, num_stats_out=NUM_STATS_OUT,
        num_gfc_layers=NUM_GFC_LAYERS)
    out = jax.block_until_ready(out)
    assert out.shape == (N, OUT_FEATS * NUM_STATS_OUT)
    # bf16 neighbor aggregation introduces ~0.2-0.4% relative rounding vs the
    # all-f32 reference; tolerance loosened accordingly (self term stays f32).
    assert jnp.allclose(out, ref, atol=1e-2, rtol=1e-2), "mismatch vs reference (auto tiles)"

    # Run 2: forced K-tiling (grid = (4, 2)) to exercise the accumulator
    # init/finalize path used for large graphs.
    out2 = gcaps_conv_pallas(
        adj_i8, deg, x, params,
        out_feats=OUT_FEATS, num_stats_out=NUM_STATS_OUT,
        num_gfc_layers=NUM_GFC_LAYERS, tile_m=64, tile_k=128)
    out2 = jax.block_until_ready(out2)
    assert jnp.allclose(out2, ref, atol=1e-2, rtol=1e-2), "mismatch vs reference (K-tiled)"

    # TODO(synk): true sparse/segment-sum GIN message passing (DGL edge lists)
    # has no clean small-kernel Pallas equivalent; dense adjacency matmul is used.
    print("KERNEL_OK")
</pallas_src>

<mosaic_0001>
module attributes {stable_mosaic.version = 11 : i64} {
  func.func @_gcaps_kernel(%arg0: i32, %arg1: i32, %arg2: memref<128x256xi8, #tpu.memory_space<vmem>>, %arg3: memref<256x16xbf16, #tpu.memory_space<vmem>>, %arg4: memref<128x16xf32, #tpu.memory_space<vmem>>, %arg5: memref<16x32xf32, #tpu.memory_space<vmem>>, %arg6: memref<1x32xf32, #tpu.memory_space<vmem>>, %arg7: memref<32x128xf32, #tpu.memory_space<vmem>>, %arg8: memref<1x128xf32, #tpu.memory_space<vmem>>, %arg9: memref<128x128xf32, #tpu.memory_space<vmem>>, %arg10: memref<128x16xf32, #tpu.memory_space<vmem>>) attributes {dimension_semantics = [#tpu.dimension_semantics<parallel>, #tpu.dimension_semantics<arbitrary>], iteration_bounds = array<i64: 2, 1>, scalar_prefetch = 0 : i64, scratch_operands = 1 : i64, tpu.core_type = #tpu.core_type<tc>, window_params = [{transform_indices = @transform_0, window_bounds = array<i64: 128, 256>}, {transform_indices = @transform_1, window_bounds = array<i64: 256, 16>}, {transform_indices = @transform_2, window_bounds = array<i64: 128, 16>}, {pipeline_mode = #tpu.pipeline_mode<synchronous>, transform_indices = @transform_3, window_bounds = array<i64: 16, 32>}, {pipeline_mode = #tpu.pipeline_mode<synchronous>, transform_indices = @transform_4, window_bounds = array<i64: 1, 32>}, {pipeline_mode = #tpu.pipeline_mode<synchronous>, transform_indices = @transform_5, window_bounds = array<i64: 32, 128>}, {pipeline_mode = #tpu.pipeline_mode<synchronous>, transform_indices = @transform_6, window_bounds = array<i64: 1, 128>}, {transform_indices = @transform_7, window_bounds = array<i64: 128, 128>}]} {
    %c0_i32 = arith.constant 0 : i32
    %0 = arith.cmpi eq, %arg1, %c0_i32 : i32
    %1 = arith.extui %0 : i1 to i32
    %c0_i32_0 = arith.constant 0 : i32
    %2 = arith.cmpi ne, %1, %c0_i32_0 : i32
    scf.if %2 {
      %cst_10 = arith.constant 0.000000e+00 : f32
      %13 = vector.broadcast %cst_10 : f32 to vector<128x16xf32>
      %c0_11 = arith.constant 0 : index
      %c0_12 = arith.constant 0 : index
      %14 = vector.load %arg10[%c0_11, %c0_12] : memref<128x16xf32, #tpu.memory_space<vmem>>, vector<128x16xf32>
      tpu.vector_store %arg10[%c0_11, %c0_12], %13 {strides = array<i32>} : memref<128x16xf32, #tpu.memory_space<vmem>>, vector<128x16xf32>,
    } else {
    }
    %c0 = arith.constant 0 : index
    %c0_1 = arith.constant 0 : index
    %3 = vector.load %arg2[%c0, %c0_1] : memref<128x256xi8, #tpu.memory_space<vmem>>, vector<128x256xi8>
    %4 = arith.sitofp %3 : vector<128x256xi8> to vector<128x256xbf16>
    %c0_2 = arith.constant 0 : index
    %c0_3 = arith.constant 0 : index
    %5 = vector.load %arg10[%c0_2, %c0_3] : memref<128x16xf32, #tpu.memory_space<vmem>>, vector<128x16xf32>
    %c0_4 = arith.constant 0 : index
    %c0_5 = arith.constant 0 : index
    %6 = vector.load %arg3[%c0_4, %c0_5] : memref<256x16xbf16, #tpu.memory_space<vmem>>, vector<256x16xbf16>
    %cst = arith.constant dense<0.000000e+00> : vector<128x16xf32>
    %7 = tpu.matmul %4, %6, %cst {dimension_numbers = #tpu.dot_dimension_numbers<[1], [0], [0], [1], [0, 0, 1, 1], [], []>} : vector<128x256xbf16>, vector<256x16xbf16>, vector<128x16xf32> -> vector<128x16xf32>
    %8 = arith.addf %5, %7 : vector<128x16xf32>
    %c0_6 = arith.constant 0 : index
    %c0_7 = arith.constant 0 : index
    %9 = vector.load %arg10[%c0_6, %c0_7] : memref<128x16xf32, #tpu.memory_space<vmem>>, vector<128x16xf32>
    tpu.vector_store %arg10[%c0_6, %c0_7], %8 {strides = array<i32>} : memref<128x16xf32, #tpu.memory_space<vmem>>, vector<128x16xf32>,
    %c0_i32_8 = arith.constant 0 : i32
    %10 = arith.cmpi eq, %arg1, %c0_i32_8 : i32
    %11 = arith.extui %10 : i1 to i32
    %c0_i32_9 = arith.constant 0 : i32
    %12 = arith.cmpi ne, %11, %c0_i32_9 : i32
    scf.if %12 {
      %c0_10 = arith.constant 0 : index
      %c0_11 = arith.constant 0 : index
      %13 = vector.load %arg10[%c0_10, %c0_11] : memref<128x16xf32, #tpu.memory_space<vmem>>, vector<128x16xf32>
      %c0_12 = arith.constant 0 : index
      %c0_13 = arith.constant 0 : index
      %14 = vector.load %arg4[%c0_12, %c0_13] : memref<128x16xf32, #tpu.memory_space<vmem>>, vector<128x16xf32>
      %15 = arith.addf %13, %14 : vector<128x16xf32>
      %c0_14 = arith.constant 0 : index
      %c0_15 = arith.constant 0 : index
      %16 = vector.load %arg5[%c0_14, %c0_15] : memref<16x32xf32, #tpu.memory_space<vmem>>, vector<16x32xf32>
      %c0_16 = arith.constant 0 : index
      %c0_17 = arith.constant 0 : index
      %17 = vector.load %arg6[%c0_16, %c0_17] : memref<1x32xf32, #tpu.memory_space<vmem>>, vector<1x32xf32>
      %cst_18 = arith.constant dense<0.000000e+00> : vector<128x32xf32>
      %18 = tpu.matmul %15, %16, %cst_18 {dimension_numbers = #tpu.dot_dimension_numbers<[1], [0], [0], [1], [0, 0, 1, 1], [], []>} : vector<128x16xf32>, vector<16x32xf32>, vector<128x32xf32> -> vector<128x32xf32>
      %19 = vector.broadcast %17 : vector<1x32xf32> to vector<128x32xf32>
      %20 = arith.addf %18, %19 : vector<128x32xf32>
      %cst_19 = arith.constant 0.000000e+00 : f32
      %21 = vector.broadcast %cst_19 : f32 to vector<128x32xf32>
      %22 = arith.maximumf %20, %21 : vector<128x32xf32>
      %c0_20 = arith.constant 0 : index
      %c0_21 = arith.constant 0 : index
      %23 = vector.load %arg7[%c0_20, %c0_21] : memref<32x128xf32, #tpu.memory_space<vmem>>, vector<32x128xf32>
      %c0_22 = arith.constant 0 : index
      %c0_23 = arith.constant 0 : index
      %24 = vector.load %arg8[%c0_22, %c0_23] : memref<1x128xf32, #tpu.memory_space<vmem>>, vector<1x128xf32>
      %cst_24 = arith.constant dense<0.000000e+00> : vector<128x128xf32>
      %25 = tpu.matmul %22, %23, %cst_24 {dimension_numbers = #tpu.dot_dimension_numbers<[1], [0], [0], [1], [0, 0, 1, 1], [], []>} : vector<128x32xf32>, vector<32x128xf32>, vector<128x128xf32> -> vector<128x128xf32>
      %26 = vector.broadcast %24 : vector<1x128xf32> to vector<128x128xf32>
      %27 = arith.addf %25, %26 : vector<128x128xf32>
      %cst_25 = arith.constant 0.000000e+00 : f32
      %28 = vector.broadcast %cst_25 : f32 to vector<128x128xf32>
      %29 = arith.maximumf %27, %28 : vector<128x128xf32>
      %c0_26 = arith.constant 0 : index
      %c0_27 = arith.constant 0 : index
      %30 = vector.load %arg9[%c0_26, %c0_27] : memref<128x128xf32, #tpu.memory_space<vmem>>, vector<128x128xf32>
      tpu.vector_store %arg9[%c0_26, %c0_27], %29 {strides = array<i32>} : memref<128x128xf32, #tpu.memory_space<vmem>>, vector<128x128xf32>,
    } else {
    }
    return
  }
  func.func @transform_0(%arg0: i32, %arg1: i32) -> (i32, i32) {
    %c0_i32 = arith.constant 0 : i32
    return %arg0, %arg1 : i32, i32
  }
  func.func @transform_1(%arg0: i32, %arg1: i32) -> (i32, i32) {
    %c0_i32 = arith.constant 0 : i32
    %c0_i32_0 = arith.constant 0 : i32
    return %arg1, %c0_i32 : i32, i32
  }
  func.func @transform_2(%arg0: i32, %arg1: i32) -> (i32, i32) {
    %c0_i32 = arith.constant 0 : i32
    %c0_i32_0 = arith.constant 0 : i32
    return %arg0, %c0_i32 : i32, i32
  }
  func.func @transform_3(%arg0: i32, %arg1: i32) -> (i32, i32) {
    %c0_i32 = arith.constant 0 : i32
    %c0_i32_0 = arith.constant 0 : i32
    %c0_i32_1 = arith.constant 0 : i32
    return %c0_i32, %c0_i32_0 : i32, i32
  }
  func.func @transform_4(%arg0: i32, %arg1: i32) -> (i32, i32) {
    %c0_i32 = arith.constant 0 : i32
    %c0_i32_0 = arith.constant 0 : i32
    %c0_i32_1 = arith.constant 0 : i32
    return %c0_i32, %c0_i32_0 : i32, i32
  }
  func.func @transform_5(%arg0: i32, %arg1: i32) -> (i32, i32) {
    %c0_i32 = arith.constant 0 : i32
    %c0_i32_0 = arith.constant 0 : i32
    %c0_i32_1 = arith.constant 0 : i32
    return %c0_i32, %c0_i32_0 : i32, i32
  }
  func.func @transform_6(%arg0: i32, %arg1: i32) -> (i32, i32) {
    %c0_i32 = arith.constant 0 : i32
    %c0_i32_0 = arith.constant 0 : i32
    %c0_i32_1 = arith.constant 0 : i32
    return %c0_i32, %c0_i32_0 : i32, i32
  }
  func.func @transform_7(%arg0: i32, %arg1: i32) -> (i32, i32) {
    %c0_i32 = arith.constant 0 : i32
    %c0_i32_0 = arith.constant 0 : i32
    return %arg0, %c0_i32 : i32, i32
  }
}

</mosaic_0001>

<llo_original>
// kernel: tpu_custom_call.1
$region0: #{tpu_custom_call.1}
  #allocation0 [shape = 'u32[]', space=smem, size = 0x4, offset = 0x4, fixed_abs, tag = 'smem constant byte address 0x4 - core index']
  #allocation1 [shape = 'u32[72,128]{1,0:T(1,128)}', space=vmem, size = 0x9000, scoped, tag = 'internal scratch']
  #allocation2 [shape = 'f32[128,16]{1,0:T(8,128)}', space=vmem, size = 0x10000, scoped, tag = 'scratch operand']
  %s0 = inlined_call_operand.vmem [shape: s8[256,256], index: 0, kind: input, shape index: {}]
  %s1 = inlined_call_operand.vmem [shape: bf16[256,16], index: 1, kind: input, shape index: {}]
  %s2 = inlined_call_operand.vmem [shape: f32[256,16], index: 2, kind: input, shape index: {}]
  %s3 = inlined_call_operand.vmem [shape: f32[16,32], index: 3, kind: input, shape index: {}]
  %s4 = inlined_call_operand.vmem [shape: f32[1,32], index: 4, kind: input, shape index: {}]
  %s5 = inlined_call_operand.vmem [shape: f32[32,128], index: 5, kind: input, shape index: {}]
  %s6 = inlined_call_operand.vmem [shape: f32[1,128], index: 6, kind: input, shape index: {}]
  %s7 = inlined_call_operand.hbm [shape: f32[256,128], index: 7, kind: output, shape index: {}]
  %s8 = sld [smem:[#allocation0]]
  $region69: #{tpu_custom_call.1} parent=0
    _
  %s10 = ssub.s32 1, %s8
  %s11 = scalar_select 0, %s10, %s8
  $region1: #{tpu_custom_call.1} parent=0
    #allocation3 [shape = 'u8[131072]{0}', space=vmem, size = 0x20000, scoped, tag = 'output window, operand 0']
    #allocation4 [shape = 's32[2]{0}', space=sflag, size = 0x8, scoped, tag = 'scoped memory for tpu_custom_call.1']
    %12 = vsyncpa [#allocation4], 0
    %s13 = scalar_lea.sflag [#allocation4], 1
    %14 = vsyncpa %s13, 0
    loop: start=0, step=1, limit=4
    $region2: #{tpu_custom_call.1} parent=1 // loop_pre_header
      _
    $region3: #{tpu_custom_call.1} parent=1 // loop_header
      %s16 = sphi 0, %s20
      %p17 = scmp.ge.s32.totalorder %s16, 4
      %s23 = sphi 0, %s35
      %s24 = sphi 0, %s31
      %s25 = sphi 0, %s23
      %s26 = sphi 0, %s24
      %s27 = sphi 0, %s25
      %s28 = sphi 0, %s26
      %s40 = sphi 0, %s42
      %s43 = sphi 0, %s40
      %s44 = sphi 0, %s43
      %s60 = sphi 0, %s44
      %s66 = sphi 0, %s68
      %s69 = sphi 0, %s66
      %s70 = sphi 0, %s69
      %s86 = sphi 0, %s70
      %s92 = sphi 0, %s94
      %s95 = sphi 0, %s92
      %s96 = sphi 0, %s95
      %s112 = sphi 0, %s96
      %s116 = sphi 0, %s116
      %s118 = sphi 0, %s116
      %s119 = sphi 0, %s118
      %s133 = sphi 0, %s119
      %s137 = sphi 0, %s137
      %s139 = sphi 0, %s137
      %s140 = sphi 0, %s139
      %s154 = sphi 0, %s140
      %s158 = sphi 0, %s158
      %s160 = sphi 0, %s158
      %s161 = sphi 0, %s160
      %s175 = sphi 0, %s161
      %s179 = sphi 0, %s179
      %s181 = sphi 0, %s179
      %s182 = sphi 0, %s181
      %s196 = sphi 0, %s182
      %s202 = sphi 0, %s204
      %s205 = sphi 0, %s202
      %s206 = sphi 0, %s205
      %s222 = sphi 0, %s206
    $region4: #{tpu_custom_call.1} parent=1 // loop_header_branch
      %19 = sbr.rel (%p17) target = $region8
    $region5: #{tpu_custom_call.1} parent=1 // loop_body
      %s21 = ssub.s32 %s16, 1
      %s22 = ssub.s32 %s16, 2
      %s29 = sadd.s32 1, %s24
      %p30 = scmp.ge.s32.totalorder %s29, 1
      %s31 = scalar_select %p30, 0, %s29
      %s32 = sadd.s32 1, %s23
      %s33 = scalar_select %p30, %s32, %s23
      %p34 = scmp.ge.s32.totalorder %s33, 2
      %s35 = scalar_select %p34, 0, %s33
      %s36 = ssub.s32 %s23, %s35
      %s37 = ssub.s32 %s24, %s31
      %s38 = sor.u32 %s36, %s37
      %p39 = scmp.eq.s32.totalorder %s38, 0
      %s41 = sadd.s32 %s40, 1
      %s42 = scalar_select %p39, %s40, %s41
      %p45 = pneg %p39
      %p46 = scmp.eq.s32.totalorder %s16, 1
      %p47 = por %p45, %p46
      %p48 = scmp.ne.s32.totalorder %s40, %s43
      %p49 = scmp.eq.s32.totalorder %s16, 0
      %p50 = por %p48, %p49
      %p51 = scmp.ne.s32.totalorder %s40, %s43
      %p52 = scmp.eq.s32.totalorder %s21, 1
      %p53 = por %p51, %p52
      %p54 = scmp.ne.s32.totalorder %s43, %s44
      %p55 = scmp.eq.s32.totalorder %s21, 0
      %p56 = por %p54, %p55
      %p57 = scmp.ne.s32.totalorder %s43, %s44
      %p58 = scmp.eq.s32.totalorder %s22, 1
      %p59 = por %p57, %p58
      %p61 = scmp.ne.s32.totalorder %s44, %s60
      %p62 = scmp.eq.s32.totalorder %s22, 0
      %p63 = por %p61, %p62
      %s64 = ssub.s32 %s24, %s31
      %p65 = scmp.eq.s32.totalorder %s64, 0
      %s67 = sadd.s32 %s66, 1
      %s68 = scalar_select %p65, %s66, %s67
      %p71 = pneg %p65
      %p72 = scmp.eq.s32.totalorder %s16, 1
      %p73 = por %p71, %p72
      %p74 = scmp.ne.s32.totalorder %s66, %s69
      %p75 = scmp.eq.s32.totalorder %s16, 0
      %p76 = por %p74, %p75
      %p77 = scmp.ne.s32.totalorder %s66, %s69
      %p78 = scmp.eq.s32.totalorder %s21, 1
      %p79 = por %p77, %p78
      %p80 = scmp.ne.s32.totalorder %s69, %s70
      %p81 = scmp.eq.s32.totalorder %s21, 0
      %p82 = por %p80, %p81
      %p83 = scmp.ne.s32.totalorder %s69, %s70
      %p84 = scmp.eq.s32.totalorder %s22, 1
      %p85 = por %p83, %p84
      %p87 = scmp.ne.s32.totalorder %s70, %s86
      %p88 = scmp.eq.s32.totalorder %s22, 0
      %p89 = por %p87, %p88
      %s90 = ssub.s32 %s23, %s35
      %p91 = scmp.eq.s32.totalorder %s90, 0
      %s93 = sadd.s32 %s92, 1
      %s94 = scalar_select %p91, %s92, %s93
      %p97 = pneg %p91
      %p98 = scmp.eq.s32.totalorder %s16, 1
      %p99 = por %p97, %p98
      %p100 = scmp.ne.s32.totalorder %s92, %s95
      %p101 = scmp.eq.s32.totalorder %s16, 0
      %p102 = por %p100, %p101
      %p103 = scmp.ne.s32.totalorder %s92, %s95
      %p104 = scmp.eq.s32.totalorder %s21, 1
      %p105 = por %p103, %p104
      %p106 = scmp.ne.s32.totalorder %s95, %s96
      %p107 = scmp.eq.s32.totalorder %s21, 0
      %p108 = por %p106, %p107
      %p109 = scmp.ne.s32.totalorder %s95, %s96
      %p110 = scmp.eq.s32.totalorder %s22, 1
      %p111 = por %p109, %p110
      %p113 = scmp.ne.s32.totalorder %s96, %s112
      %p114 = scmp.eq.s32.totalorder %s22, 0
      %p115 = por %p113, %p114
      %s117 = sadd.s32 %s116, 1
      %p120 = scmp.eq.s32.totalorder %s16, 1
      %p121 = scmp.ne.s32.totalorder %s116, %s118
      %p122 = scmp.eq.s32.totalorder %s16, 0
      %p123 = por %p121, %p122
      %p124 = scmp.ne.s32.totalorder %s116, %s118
      %p125 = scmp.eq.s32.totalorder %s21, 1
      %p126 = por %p124, %p125
      %p127 = scmp.ne.s32.totalorder %s118, %s119
      %p128 = scmp.eq.s32.totalorder %s21, 0
      %p129 = por %p127, %p128
      %p130 = scmp.ne.s32.totalorder %s118, %s119
      %p131 = scmp.eq.s32.totalorder %s22, 1
      %p132 = por %p130, %p131
      %p134 = scmp.ne.s32.totalorder %s119, %s133
      %p135 = scmp.eq.s32.totalorder %s22, 0
      %p136 = por %p134, %p135
      %s138 = sadd.s32 %s137, 1
      %p141 = scmp.eq.s32.totalorder %s16, 1
      %p142 = scmp.ne.s32.totalorder %s137, %s139
      %p143 = scmp.eq.s32.totalorder %s16, 0
      %p144 = por %p142, %p143
      %p145 = scmp.ne.s32.totalorder %s137, %s139
      %p146 = scmp.eq.s32.totalorder %s21, 1
      %p147 = por %p145, %p146
      %p148 = scmp.ne.s32.totalorder %s139, %s140
      %p149 = scmp.eq.s32.totalorder %s21, 0
      %p150 = por %p148, %p149
      %p151 = scmp.ne.s32.totalorder %s139, %s140
      %p152 = scmp.eq.s32.totalorder %s22, 1
      %p153 = por %p151, %p152
      %p155 = scmp.ne.s32.totalorder %s140, %s154
      %p156 = scmp.eq.s32.totalorder %s22, 0
      %p157 = por %p155, %p156
      %s159 = sadd.s32 %s158, 1
      %p162 = scmp.eq.s32.totalorder %s16, 1
      %p163 = scmp.ne.s32.totalorder %s158, %s160
      %p164 = scmp.eq.s32.totalorder %s16, 0
      %p165 = por %p163, %p164
      %p166 = scmp.ne.s32.totalorder %s158, %s160
      %p167 = scmp.eq.s32.totalorder %s21, 1
      %p168 = por %p166, %p167
      %p169 = scmp.ne.s32.totalorder %s160, %s161
      %p170 = scmp.eq.s32.totalorder %s21, 0
      %p171 = por %p169, %p170
      %p172 = scmp.ne.s32.totalorder %s160, %s161
      %p173 = scmp.eq.s32.totalorder %s22, 1
      %p174 = por %p172, %p173
      %p176 = scmp.ne.s32.totalorder %s161, %s175
      %p177 = scmp.eq.s32.totalorder %s22, 0
      %p178 = por %p176, %p177
      %s180 = sadd.s32 %s179, 1
      %p183 = scmp.eq.s32.totalorder %s16, 1
      %p184 = scmp.ne.s32.totalorder %s179, %s181
      %p185 = scmp.eq.s32.totalorder %s16, 0
      %p186 = por %p184, %p185
      %p187 = scmp.ne.s32.totalorder %s179, %s181
      %p188 = scmp.eq.s32.totalorder %s21, 1
      %p189 = por %p187, %p188
      %p190 = scmp.ne.s32.totalorder %s181, %s182
      %p191 = scmp.eq.s32.totalorder %s21, 0
      %p192 = por %p190, %p191
      %p193 = scmp.ne.s32.totalorder %s181, %s182
      %p194 = scmp.eq.s32.totalorder %s22, 1
      %p195 = por %p193, %p194
      %p197 = scmp.ne.s32.totalorder %s182, %s196
      %p198 = scmp.eq.s32.totalorder %s22, 0
      %p199 = por %p197, %p198
      %s200 = ssub.s32 %s23, %s35
      %p201 = scmp.eq.s32.totalorder %s200, 0
      %s203 = sadd.s32 %s202, 1
      %s204 = scalar_select %p201, %s202, %s203
      %p207 = pneg %p201
      %p208 = scmp.eq.s32.totalorder %s16, 1
      %p209 = por %p207, %p208
      %p210 = scmp.ne.s32.totalorder %s202, %s205
      %p211 = scmp.eq.s32.totalorder %s16, 0
      %p212 = por %p210, %p211
      %p213 = scmp.ne.s32.totalorder %s202, %s205
      %p214 = scmp.eq.s32.totalorder %s21, 1
      %p215 = por %p213, %p214
      %p216 = scmp.ne.s32.totalorder %s205, %s206
      %p217 = scmp.eq.s32.totalorder %s21, 0
      %p218 = por %p216, %p217
      %p219 = scmp.ne.s32.totalorder %s205, %s206
      %p220 = scmp.eq.s32.totalorder %s22, 1
      %p221 = por %p219, %p220
      %p223 = scmp.ne.s32.totalorder %s206, %s222
      %p224 = scmp.eq.s32.totalorder %s22, 0
      %p225 = por %p223, %p224
      %p226 = scmp.le.s32.totalorder 1, %s16
      %p227 = scmp.lt.s32.totalorder %s16, 3
      %p228 = pnand %p226, %p227
      %p229 = pneg %p228
      // Predicated region
      $region9: #{tpu_custom_call.1} parent=5 // pred_check
        _
      $region10: #{tpu_custom_call.1} parent=5 // pred_check_branch
        %231 = sbr.rel (%p228) target = $region12
      $region11: #{tpu_custom_call.1} parent=5 // pred_region
        %s232 = ssub.s32 %s16, 1
        // Predicated region
        $region13: #{tpu_custom_call.1} parent=11 // pred_check
          %p233 = pneg %p82
        $region14: #{tpu_custom_call.1} parent=11 // pred_check_branch
          %235 = sbr.rel (%p233) target = $region16
        $region15: #{tpu_custom_call.1} parent=11 // pred_region
          %s236 = smul.u32 32, %s26
          %p237 = scmp.lt.s32.totalorder %s236, 31
          %s238 = scalar_select %p237, %s236, 31
          %s239 = smul.addr %s238, 4
          %s240 = scalar_lea.vmem %s1, %s239
          %s241 = smul.u32 32, %s26
        $region16: #{tpu_custom_call.1} parent=11 // pred_fallthru
          _
        // Predicated region
        $region17: #{tpu_custom_call.1} parent=11 // pred_check
          %p242 = pneg %p129
        $region18: #{tpu_custom_call.1} parent=11 // pred_check_branch
          %244 = sbr.rel (%p242) target = $region20
        $region19: #{tpu_custom_call.1} parent=11 // pred_region
          _
        $region20: #{tpu_custom_call.1} parent=11 // pred_fallthru
          _
        // Predicated region
        $region21: #{tpu_custom_call.1} parent=11 // pred_check
          %p245 = pneg %p150
        $region22: #{tpu_custom_call.1} parent=11 // pred_check_branch
          %247 = sbr.rel (%p245) target = $region24
        $region23: #{tpu_custom_call.1} parent=11 // pred_region
          _
        $region24: #{tpu_custom_call.1} parent=11 // pred_fallthru
          _
        // Predicated region
        $region25: #{tpu_custom_call.1} parent=11 // pred_check
          %p248 = pneg %p171
        $region26: #{tpu_custom_call.1} parent=11 // pred_check_branch
          %250 = sbr.rel (%p248) target = $region28
        $region27: #{tpu_custom_call.1} parent=11 // pred_region
          _
        $region28: #{tpu_custom_call.1} parent=11 // pred_fallthru
          _
        // Predicated region
        $region29: #{tpu_custom_call.1} parent=11 // pred_check
          %p251 = pneg %p192
        $region30: #{tpu_custom_call.1} parent=11 // pred_check_branch
          %253 = sbr.rel (%p251) target = $region32
        $region31: #{tpu_custom_call.1} parent=11 // pred_region
          _
        $region32: #{tpu_custom_call.1} parent=11 // pred_fallthru
          _
      $region12: #{tpu_custom_call.1} parent=5 // pred_fallthru
        _
      %p254 = scmp.lt.s32.totalorder %s16, 2
      // Predicated region
      $region33: #{tpu_custom_call.1} parent=5 // pred_check
        %p255 = pneg %p254
      $region34: #{tpu_custom_call.1} parent=5 // pred_check_branch
        %257 = sbr.rel (%p255) target = $region36
      $region35: #{tpu_custom_call.1} parent=5 // pred_region
        // Predicated region
        $region37: #{tpu_custom_call.1} parent=35 // pred_check
          %p258 = pneg %p50
        $region38: #{tpu_custom_call.1} parent=35 // pred_check_branch
          %260 = sbr.rel (%p258) target = $region40
        $region39: #{tpu_custom_call.1} parent=35 // pred_region
          %s261 = smul.u32 4, %s23
          %s262 = smul.u32 2, %s24
          %p263 = scmp.lt.s32.totalorder %s261, 7
          %s264 = scalar_select %p263, %s261, 7
          %p265 = scmp.lt.s32.totalorder %s262, 1
          %s266 = scalar_select %p265, %s262, 1
          %s267 = smul.addr %s264, 2
          %s268 = sadd.s32 %s266, %s267
          %s269 = smul.addr %s268, 8
          %s270 = scalar_lea.vmem %s0, %s269
          %s271 = smul.u32 4, %s23
          %s272 = smul.u32 2, %s24
        $region40: #{tpu_custom_call.1} parent=35 // pred_fallthru
          _
        // Predicated region
        $region41: #{tpu_custom_call.1} parent=35 // pred_check
          %p273 = pneg %p102
        $region42: #{tpu_custom_call.1} parent=35 // pred_check_branch
          %275 = sbr.rel (%p273) target = $region44
        $region43: #{tpu_custom_call.1} parent=35 // pred_region
          %s276 = smul.u32 16, %s23
          %p277 = scmp.lt.s32.totalorder %s276, 31
          %s278 = scalar_select %p277, %s276, 31
          %s279 = smul.addr %s278, 8
          %s280 = scalar_lea.vmem %s2, %s279
          %s281 = smul.u32 16, %s23
        $region44: #{tpu_custom_call.1} parent=35 // pred_fallthru
          _
      $region36: #{tpu_custom_call.1} parent=5 // pred_fallthru
        _
      %p282 = scmp.le.s32.totalorder 1, %s16
      %p283 = scmp.lt.s32.totalorder %s16, 3
      %p284 = pnand %p282, %p283
      %p285 = pneg %p284
      // Predicated region
      $region45: #{tpu_custom_call.1} parent=5 // pred_check
        _
      $region46: #{tpu_custom_call.1} parent=5 // pred_check_branch
        %287 = sbr.rel (%p284) target = $region48
      $region47: #{tpu_custom_call.1} parent=5 // pred_region
        %s288 = ssub.s32 %s16, 1
        %s289 = smul.u32 4, %s25
        %s290 = smul.u32 2, %s26
        %p291 = scmp.lt.s32.totalorder %s289, 7
        %s292 = scalar_select %p291, %s289, 7
        %p293 = scmp.lt.s32.totalorder %s290, 1
        %s294 = scalar_select %p293, %s290, 1
        %s295 = smul.addr %s292, 2
        %s296 = sadd.s32 %s294, %s295
        %s297 = smul.addr %s296, 8
        %s298 = scalar_lea.vmem %s0, %s297
        %p299 = pneg %p56
        %p300 = pneg %p53
        %s301 = smul.u32 32, %s26
        %p302 = scmp.lt.s32.totalorder %s301, 31
        %s303 = scalar_select %p302, %s301, 31
        %s304 = smul.addr %s303, 4
        %s305 = scalar_lea.vmem %s1, %s304
        %p306 = pneg %p82
        %p307 = pneg %p79
        %s308 = smul.u32 16, %s25
        %p309 = scmp.lt.s32.totalorder %s308, 31
        %s310 = scalar_select %p309, %s308, 31
        %s311 = smul.addr %s310, 8
        %s312 = scalar_lea.vmem %s2, %s311
        %p313 = pneg %p108
        %p314 = pneg %p105
        %p315 = pneg %p129
        %p316 = pneg %p126
        %p317 = pneg %p150
        %p318 = pneg %p147
        %p319 = pneg %p171
        %p320 = pneg %p168
        %p321 = pneg %p192
        %p322 = pneg %p189
        %p323 = pneg %p218
        %p324 = pneg %p215
        %s325 = sand.u32 %s205, 1
        %s326 = scalar_lea.sflag [#allocation4], %s325
        %s327 = sand.u32 %s205, 1
        %s328 = smul.addr %s327, 128
        %s329 = scalar_lea.vmem [#allocation3], %s328
        %s330 = smul.u32 4, %s25
        %s331 = smul.u32 2, %s26
        %p332 = scmp.lt.s32.totalorder %s330, 7
        %s333 = scalar_select %p332, %s330, 7
        %p334 = scmp.lt.s32.totalorder %s331, 1
        %s335 = scalar_select %p334, %s331, 1
        %s336 = smul.addr %s333, 2
        %s337 = sadd.s32 %s335, %s336
        %s338 = smul.addr %s337, 8
        %s339 = scalar_lea.vmem %s0, %s338
        %s340 = smul.u32 4, %s25
        %s341 = smul.u32 2, %s26
        %s342 = smul.u32 32, %s26
        %p343 = scmp.lt.s32.totalorder %s342, 31
        %s344 = scalar_select %p343, %s342, 31
        %s345 = smul.addr %s344, 4
        %s346 = scalar_lea.vmem %s1, %s345
        %s347 = smul.u32 32, %s26
        %s348 = smul.u32 16, %s25
        %p349 = scmp.lt.s32.totalorder %s348, 31
        %s350 = scalar_select %p349, %s348, 31
        %s351 = smul.addr %s350, 8
        %s352 = scalar_lea.vmem %s2, %s351
        %s353 = smul.u32 16, %s25
        %s354 = smul.u32 16, %s25
        %p355 = scmp.eq.s32.totalorder %s26, 0
        // Predicated region
        $region49: #{tpu_custom_call.1} parent=47 // pred_check
          %p356 = pneg %p355
        $region50: #{tpu_custom_call.1} parent=47 // pred_check_branch
          %358 = sbr.rel (%p356) target = $region52
        $region51: #{tpu_custom_call.1} parent=47 // pred_region
          %vm359 = vcmask 130048
          %360 = vst.msk [vmem:[#allocation2] sm:$0xff] %vm359, 0.0
          %361 = vst.msk [vmem:[#allocation2 + $0x8] sm:$0xff] %vm359, 0.0
          %362 = vst.msk [vmem:[#allocation2 + $0x10] sm:$0xff] %vm359, 0.0
          %363 = vst.msk [vmem:[#allocation2 + $0x18] sm:$0xff] %vm359, 0.0
          %364 = vst.msk [vmem:[#allocation2 + $0x20] sm:$0xff] %vm359, 0.0
          %365 = vst.msk [vmem:[#allocation2 + $0x28] sm:$0xff] %vm359, 0.0
          %366 = vst.msk [vmem:[#allocation2 + $0x30] sm:$0xff] %vm359, 0.0
          %367 = vst.msk [vmem:[#allocation2 + $0x38] sm:$0xff] %vm359, 0.0
          %368 = vst.msk [vmem:[#allocation2 + $0x40] sm:$0xff] %vm359, 0.0
          %369 = vst.msk [vmem:[#allocation2 + $0x48] sm:$0xff] %vm359, 0.0
          %370 = vst.msk [vmem:[#allocation2 + $0x50] sm:$0xff] %vm359, 0.0
          %371 = vst.msk [vmem:[#allocation2 + $0x58] sm:$0xff] %vm359, 0.0
          %372 = vst.msk [vmem:[#allocation2 + $0x60] sm:$0xff] %vm359, 0.0
          %373 = vst.msk [vmem:[#allocation2 + $0x68] sm:$0xff] %vm359, 0.0
          %374 = vst.msk [vmem:[#allocation2 + $0x70] sm:$0xff] %vm359, 0.0
          %375 = vst.msk [vmem:[#allocation2 + $0x78] sm:$0xff] %vm359, 0.0
        $region52: #{tpu_custom_call.1} parent=47 // pred_fallthru
          _
        %v376 = vld [vmem:[%s339] sm:$0xff]
        %v377 = vld [vmem:[%s339 + $0x8] sm:$0xff]
        %v378 = vld [vmem:[%s339 + $0x10] sm:$0xff]
        %v379 = vld [vmem:[%s339 + $0x18] sm:$0xff]
        %v380 = vld [vmem:[%s339 + $0x20] sm:$0xff]
        %v381 = vld [vmem:[%s339 + $0x28] sm:$0xff]
        %v382 = vld [vmem:[%s339 + $0x30] sm:$0xff]
        %v383 = vld [vmem:[%s339 + $0x38] sm:$0xff]
        %v384 = vunpack.c.0.s8 %v376
        %v385 = vunpack.c.0.s8 %v377
        %v386 = vunpack.c.1.s8 %v376
        %v387 = vunpack.c.1.s8 %v377
        %v388 = vunpack.c.2.s8 %v376
        %v389 = vunpack.c.2.s8 %v377
        %v390 = vunpack.c.3.s8 %v376
        %v391 = vunpack.c.3.s8 %v377
        %v392 = vunpack.c.0.s8 %v378
        %v393 = vunpack.c.0.s8 %v379
        %v394 = vunpack.c.1.s8 %v378
        %v395 = vunpack.c.1.s8 %v379
        %v396 = vunpack.c.2.s8 %v378
        %v397 = vunpack.c.2.s8 %v379
        %v398 = vunpack.c.3.s8 %v378
        %v399 = vunpack.c.3.s8 %v379
        %v400 = vunpack.c.0.s8 %v380
        %v401 = vunpack.c.0.s8 %v381
        %v402 = vunpack.c.1.s8 %v380
        %v403 = vunpack.c.1.s8 %v381
        %v404 = vunpack.c.2.s8 %v380
        %v405 = vunpack.c.2.s8 %v381
        %v406 = vunpack.c.3.s8 %v380
        %v407 = vunpack.c.3.s8 %v381
        %v408 = vunpack.c.0.s8 %v382
        %v409 = vunpack.c.0.s8 %v383
        %v410 = vunpack.c.1.s8 %v382
        %v411 = vunpack.c.1.s8 %v383
        %v412 = vunpack.c.2.s8 %v382
        %v413 = vunpack.c.2.s8 %v383
        %v414 = vunpack.c.3.s8 %v382
        %v415 = vunpack.c.3.s8 %v383
        %v416 = vcvt.s32.f32 %v384
        %v417 = vcvt.s32.f32 %v385
        %v418 = vcvt.s32.f32 %v386
        %v419 = vcvt.s32.f32 %v387
        %v420 = vcvt.s32.f32 %v388
        %v421 = vcvt.s32.f32 %v389
        %v422 = vcvt.s32.f32 %v390
        %v423 = vcvt.s32.f32 %v391
        %v424 = vcvt.s32.f32 %v392
        %v425 = vcvt.s32.f32 %v393
        %v426 = vcvt.s32.f32 %v394
        %v427 = vcvt.s32.f32 %v395
        %v428 = vcvt.s32.f32 %v396
        %v429 = vcvt.s32.f32 %v397
        %v430 = vcvt.s32.f32 %v398
        %v431 = vcvt.s32.f32 %v399
        %v432 = vcvt.s32.f32 %v400
        %v433 = vcvt.s32.f32 %v401
        %v434 = vcvt.s32.f32 %v402
        %v435 = vcvt.s32.f32 %v403
        %v436 = vcvt.s32.f32 %v404
        %v437 = vcvt.s32.f32 %v405
        %v438 = vcvt.s32.f32 %v406
        %v439 = vcvt.s32.f32 %v407
        %v440 = vcvt.s32.f32 %v408
        %v441 = vcvt.s32.f32 %v409
        %v442 = vcvt.s32.f32 %v410
        %v443 = vcvt.s32.f32 %v411
        %v444 = vcvt.s32.f32 %v412
        %v445 = vcvt.s32.f32 %v413
        %v446 = vcvt.s32.f32 %v414
        %v447 = vcvt.s32.f32 %v415
        %v448 = vpack.c.bf16 %v418, %v416
        %v449 = vpack.c.bf16 %v419, %v417
        %v450 = vpack.c.bf16 %v422, %v420
        %v451 = vpack.c.bf16 %v423, %v421
        %v452 = vpack.c.bf16 %v426, %v424
        %v453 = vpack.c.bf16 %v427, %v425
        %v454 = vpack.c.bf16 %v430, %v428
        %v455 = vpack.c.bf16 %v431, %v429
        %v456 = vpack.c.bf16 %v434, %v432
        %v457 = vpack.c.bf16 %v435, %v433
        %v458 = vpack.c.bf16 %v438, %v436
        %v459 = vpack.c.bf16 %v439, %v437
        %v460 = vpack.c.bf16 %v442, %v440
        %v461 = vpack.c.bf16 %v443, %v441
        %v462 = vpack.c.bf16 %v446, %v444
        %v463 = vpack.c.bf16 %v447, %v445
        %v464 = vld [vmem:[#allocation2] sm:$0xff]
        %v465 = vld [vmem:[#allocation2 + $0x8] sm:$0xff]
        %v466 = vld [vmem:[#allocation2 + $0x10] sm:$0xff]
        %v467 = vld [vmem:[#allocation2 + $0x18] sm:$0xff]
        %v468 = vld [vmem:[#allocation2 + $0x20] sm:$0xff]
        %v469 = vld [vmem:[#allocation2 + $0x28] sm:$0xff]
        %v470 = vld [vmem:[#allocation2 + $0x30] sm:$0xff]
        %v471 = vld [vmem:[#allocation2 + $0x38] sm:$0xff]
        %v472 = vld [vmem:[#allocation2 + $0x40] sm:$0xff]
        %v473 = vld [vmem:[#allocation2 + $0x48] sm:$0xff]
        %v474 = vld [vmem:[#allocation2 + $0x50] sm:$0xff]
        %v475 = vld [vmem:[#allocation2 + $0x58] sm:$0xff]
        %v476 = vld [vmem:[#allocation2 + $0x60] sm:$0xff]
        %v477 = vld [vmem:[#allocation2 + $0x68] sm:$0xff]
        %v478 = vld [vmem:[#allocation2 + $0x70] sm:$0xff]
        %v479 = vld [vmem:[#allocation2 + $0x78] sm:$0xff]
        %v480 = vld [vmem:[%s346] sm:$0xf]
        %v481 = vld [vmem:[%s346 + $0x4] sm:$0xf]
        %v482 = vld [vmem:[%s346 + $0x8] sm:$0xf]
        %v483 = vld [vmem:[%s346 + $0xc] sm:$0xf]
        %v484 = vld [vmem:[%s346 + $0x10] sm:$0xf]
        %v485 = vld [vmem:[%s346 + $0x14] sm:$0xf]
        %v486 = vld [vmem:[%s346 + $0x18] sm:$0xf]
        %v487 = vld [vmem:[%s346 + $0x1c] sm:$0xf]
        %v488 = vld [vmem:[%s346 + $0x20] sm:$0xf]
        %v489 = vld [vmem:[%s346 + $0x24] sm:$0xf]
        %v490 = vld [vmem:[%s346 + $0x28] sm:$0xf]
        %v491 = vld [vmem:[%s346 + $0x2c] sm:$0xf]
        %v492 = vld [vmem:[%s346 + $0x30] sm:$0xf]
        %v493 = vld [vmem:[%s346 + $0x34] sm:$0xf]
        %v494 = vld [vmem:[%s346 + $0x38] sm:$0xf]
        %v495 = vld [vmem:[%s346 + $0x3c] sm:$0xf]
        %v496 = vld [vmem:[%s346 + $0x40] sm:$0xf]
        %v497 = vld [vmem:[%s346 + $0x44] sm:$0xf]
        %v498 = vld [vmem:[%s346 + $0x48] sm:$0xf]
        %v499 = vld [vmem:[%s346 + $0x4c] sm:$0xf]
        %v500 = vld [vmem:[%s346 + $0x50] sm:$0xf]
        %v501 = vld [vmem:[%s346 + $0x54] sm:$0xf]
        %v502 = vld [vmem:[%s346 + $0x58] sm:$0xf]
        %v503 = vld [vmem:[%s346 + $0x5c] sm:$0xf]
        %v504 = vld [vmem:[%s346 + $0x60] sm:$0xf]
        %v505 = vld [vmem:[%s346 + $0x64] sm:$0xf]
        %v506 = vld [vmem:[%s346 + $0x68] sm:$0xf]
        %v507 = vld [vmem:[%s346 + $0x6c] sm:$0xf]
        %v508 = vld [vmem:[%s346 + $0x70] sm:$0xf]
        %v509 = vld [vmem:[%s346 + $0x74] sm:$0xf]
        %v510 = vld [vmem:[%s346 + $0x78] sm:$0xf]
        %v511 = vld [vmem:[%s346 + $0x7c] sm:$0xf]
        %v544 = vunpack.c.l.b16 %v480
        %v545 = vunpack.c.l.b16 %v481
        %v546 = vunpack.c.l.b16 %v482
        %v547 = vunpack.c.l.b16 %v483
        %v548 = vunpack.c.l.b16 %v484
        %v549 = vunpack.c.l.b16 %v485
        %v550 = vunpack.c.l.b16 %v486
        %v551 = vunpack.c.l.b16 %v487
        %v552 = vunpack.c.l.b16 %v488
        %v553 = vunpack.c.l.b16 %v489
        %v554 = vunpack.c.l.b16 %v490
        %v555 = vunpack.c.l.b16 %v491
        %v556 = vunpack.c.l.b16 %v492
        %v557 = vunpack.c.l.b16 %v493
        %v558 = vunpack.c.l.b16 %v494
        %v559 = vunpack.c.l.b16 %v495
        %v560 = vunpack.c.l.b16 %v496
        %v561 = vunpack.c.l.b16 %v497
        %v562 = vunpack.c.l.b16 %v498
        %v563 = vunpack.c.l.b16 %v499
        %v564 = vunpack.c.l.b16 %v500
        %v565 = vunpack.c.l.b16 %v501
        %v566 = vunpack.c.l.b16 %v502
        %v567 = vunpack.c.l.b16 %v503
        %v568 = vunpack.c.l.b16 %v504
        %v569 = vunpack.c.l.b16 %v505
        %v570 = vunpack.c.l.b16 %v506
        %v571 = vunpack.c.l.b16 %v507
        %v572 = vunpack.c.l.b16 %v508
        %v573 = vunpack.c.l.b16 %v509
        %v574 = vunpack.c.l.b16 %v510
        %v575 = vunpack.c.l.b16 %v511
        %v576 = vpack.c.b16 %v545, %v544
        %v577 = vpack.c.b16 %v547, %v546
        %v578 = vpack.c.b16 %v549, %v548
        %v579 = vpack.c.b16 %v551, %v550
        %v580 = vpack.c.b16 %v553, %v552
        %v581 = vpack.c.b16 %v555, %v554
        %v582 = vpack.c.b16 %v557, %v556
        %v583 = vpack.c.b16 %v559, %v558
        %v584 = vpack.c.b16 %v561, %v560
        %v585 = vpack.c.b16 %v563, %v562
        %v586 = vpack.c.b16 %v565, %v564
        %v587 = vpack.c.b16 %v567, %v566
        %v588 = vpack.c.b16 %v569, %v568
        %v589 = vpack.c.b16 %v571, %v570
        %v590 = vpack.c.b16 %v573, %v572
        %v591 = vpack.c.b16 %v575, %v574
        %608 = vmatpush.bf16.msra.mxu0 %v583
        %609 = vmatpush.bf16.msra.mxu0 %v582
        %610 = vmatpush.bf16.msra.mxu0 %v581
        %611 = vmatpush.bf16.msra.mxu0 %v580
        %612 = vmatpush.bf16.msra.mxu0 %v579
        %613 = vmatpush.bf16.msra.mxu0 %v578
        %614 = vmatpush.bf16.msra.mxu0 %v577
        %615 = vmatpush.bf16.msra.mxu0 %v576
        %616 = vmatmul.bf16.gmra.mxu0 %v448
        %v617 = vpop.f32.mrf.mxu0
        %v618 = vadd.f32 0.0, %v617
        %v619 = vpop.f32.mrf.mxu0
        %v620 = vadd.f32 0.0, %v619
        %621 = vmatmul.bf16.gmra.mxu0 %v450
        %v622 = vpop.f32.mrf.mxu0
        %v623 = vadd.f32 0.0, %v622
        %v624 = vpop.f32.mrf.mxu0
        %v625 = vadd.f32 0.0, %v624
        %626 = vmatmul.bf16.gmra.mxu0 %v452
        %v627 = vpop.f32.mrf.mxu0
        %v628 = vadd.f32 0.0, %v627
        %v629 = vpop.f32.mrf.mxu0
        %v630 = vadd.f32 0.0, %v629
        %631 = vmatmul.bf16.gmra.mxu0 %v454
        %v632 = vpop.f32.mrf.mxu0
        %v633 = vadd.f32 0.0, %v632
        %v634 = vpop.f32.mrf.mxu0
        %v635 = vadd.f32 0.0, %v634
        %636 = vmatmul.bf16.gmra.mxu0 %v456
        %v637 = vpop.f32.mrf.mxu0
        %v638 = vadd.f32 0.0, %v637
        %v639 = vpop.f32.mrf.mxu0
        %v640 = vadd.f32 0.0, %v639
        %641 = vmatmul.bf16.gmra.mxu0 %v458
        %v642 = vpop.f32.mrf.mxu0
        %v643 = vadd.f32 0.0, %v642
        %v644 = vpop.f32.mrf.mxu0
        %v645 = vadd.f32 0.0, %v644
        %646 = vmatmul.bf16.gmra.mxu0 %v460
        %v647 = vpop.f32.mrf.mxu0
        %v648 = vadd.f32 0.0, %v647
        %v649 = vpop.f32.mrf.mxu0
        %v650 = vadd.f32 0.0, %v649
        %651 = vmatmul.bf16.gmra.mxu0 %v462
        %v652 = vpop.f32.mrf.mxu0
        %v653 = vadd.f32 0.0, %v652
        %v654 = vpop.f32.mrf.mxu0
        %v655 = vadd.f32 0.0, %v654
        %656 = vdwg.mxu0
        %657 = vmatpush.bf16.msra.mxu0 %v591
        %658 = vmatpush.bf16.msra.mxu0 %v590
        %659 = vmatpush.bf16.msra.mxu0 %v589
        %660 = vmatpush.bf16.msra.mxu0 %v588
        %661 = vmatpush.bf16.msra.mxu0 %v587
        %662 = vmatpush.bf16.msra.mxu0 %v586
        %663 = vmatpush.bf16.msra.mxu0 %v585
        %664 = vmatpush.bf16.msra.mxu0 %v584
        %665 = vmatmul.bf16.gmra.mxu0 %v449
        %v666 = vpop.f32.mrf.mxu0
        %v667 = vadd.f32 %v618, %v666
        %v668 = vpop.f32.mrf.mxu0
        %v669 = vadd.f32 %v620, %v668
        %670 = vmatmul.bf16.gmra.mxu0 %v451
        %v671 = vpop.f32.mrf.mxu0
        %v672 = vadd.f32 %v623, %v671
        %v673 = vpop.f32.mrf.mxu0
        %v674 = vadd.f32 %v625, %v673
        %675 = vmatmul.bf16.gmra.mxu0 %v453
        %v676 = vpop.f32.mrf.mxu0
        %v677 = vadd.f32 %v628, %v676
        %v678 = vpop.f32.mrf.mxu0
        %v679 = vadd.f32 %v630, %v678
        %680 = vmatmul.bf16.gmra.mxu0 %v455
        %v681 = vpop.f32.mrf.mxu0
        %v682 = vadd.f32 %v633, %v681
        %v683 = vpop.f32.mrf.mxu0
        %v684 = vadd.f32 %v635, %v683
        %685 = vmatmul.bf16.gmra.mxu0 %v457
        %v686 = vpop.f32.mrf.mxu0
        %v687 = vadd.f32 %v638, %v686
        %v688 = vpop.f32.mrf.mxu0
        %v689 = vadd.f32 %v640, %v688
        %690 = vmatmul.bf16.gmra.mxu0 %v459
        %v691 = vpop.f32.mrf.mxu0
        %v692 = vadd.f32 %v643, %v691
        %v693 = vpop.f32.mrf.mxu0
        %v694 = vadd.f32 %v645, %v693
        %695 = vmatmul.bf16.gmra.mxu0 %v461
        %v696 = vpop.f32.mrf.mxu0
        %v697 = vadd.f32 %v648, %v696
        %v698 = vpop.f32.mrf.mxu0
        %v699 = vadd.f32 %v650, %v698
        %700 = vmatmul.bf16.gmra.mxu0 %v463
        %v701 = vpop.f32.mrf.mxu0
        %v702 = vadd.f32 %v653, %v701
        %v703 = vpop.f32.mrf.mxu0
        %v704 = vadd.f32 %v655, %v703
        %705 = vdwg.mxu0
        %v706 = vadd.f32 %v464, %v667
        %v707 = vadd.f32 %v465, %v669
        %v708 = vadd.f32 %v466, %v672
        %v709 = vadd.f32 %v467, %v674
        %v710 = vadd.f32 %v468, %v677
        %v711 = vadd.f32 %v469, %v679
        %v712 = vadd.f32 %v470, %v682
        %v713 = vadd.f32 %v471, %v684
        %v714 = vadd.f32 %v472, %v687
        %v715 = vadd.f32 %v473, %v689
        %v716 = vadd.f32 %v474, %v692
        %v717 = vadd.f32 %v475, %v694
        %v718 = vadd.f32 %v476, %v697
        %v719 = vadd.f32 %v477, %v699
        %v720 = vadd.f32 %v478, %v702
        %v721 = vadd.f32 %v479, %v704
        %vm722 = vcmask 130048
        %723 = vst.msk [vmem:[#allocation2] sm:$0xff] %vm722, %v706
        %724 = vst.msk [vmem:[#allocation2 + $0x8] sm:$0xff] %vm722, %v707
        %725 = vst.msk [vmem:[#allocation2 + $0x10] sm:$0xff] %vm722, %v708
        %726 = vst.msk [vmem:[#allocation2 + $0x18] sm:$0xff] %vm722, %v709
        %727 = vst.msk [vmem:[#allocation2 + $0x20] sm:$0xff] %vm722, %v710
        %728 = vst.msk [vmem:[#allocation2 + $0x28] sm:$0xff] %vm722, %v711
        %729 = vst.msk [vmem:[#allocation2 + $0x30] sm:$0xff] %vm722, %v712
        %730 = vst.msk [vmem:[#allocation2 + $0x38] sm:$0xff] %vm722, %v713
        %731 = vst.msk [vmem:[#allocation2 + $0x40] sm:$0xff] %vm722, %v714
        %732 = vst.msk [vmem:[#allocation2 + $0x48] sm:$0xff] %vm722, %v715
        %733 = vst.msk [vmem:[#allocation2 + $0x50] sm:$0xff] %vm722, %v716
        %734 = vst.msk [vmem:[#allocation2 + $0x58] sm:$0xff] %vm722, %v717
        %735 = vst.msk [vmem:[#allocation2 + $0x60] sm:$0xff] %vm722, %v718
        %736 = vst.msk [vmem:[#allocation2 + $0x68] sm:$0xff] %vm722, %v719
        %737 = vst.msk [vmem:[#allocation2 + $0x70] sm:$0xff] %vm722, %v720
        %738 = vst.msk [vmem:[#allocation2 + $0x78] sm:$0xff] %vm722, %v721
        // Predicated region
        $region53: #{tpu_custom_call.1} parent=47 // pred_check
          %p739 = pneg %p355
        $region54: #{tpu_custom_call.1} parent=47 // pred_check_branch
          %741 = sbr.rel (%p739) target = $region56
        $region55: #{tpu_custom_call.1} parent=47 // pred_region
          %v742 = vld [vmem:[#allocation2] sm:$0xff]
          %v743 = vld [vmem:[#allocation2 + $0x8] sm:$0xff]
          %v744 = vld [vmem:[#allocation2 + $0x10] sm:$0xff]
          %v745 = vld [vmem:[#allocation2 + $0x18] sm:$0xff]
          %v746 = vld [vmem:[#allocation2 + $0x20] sm:$0xff]
          %v747 = vld [vmem:[#allocation2 + $0x28] sm:$0xff]
          %v748 = vld [vmem:[#allocation2 + $0x30] sm:$0xff]
          %v749 = vld [vmem:[#allocation2 + $0x38] sm:$0xff]
          %v750 = vld [vmem:[#allocation2 + $0x40] sm:$0xff]
          %v751 = vld [vmem:[#allocation2 + $0x48] sm:$0xff]
          %v752 = vld [vmem:[#allocation2 + $0x50] sm:$0xff]
          %v753 = vld [vmem:[#allocation2 + $0x58] sm:$0xff]
          %v754 = vld [vmem:[#allocation2 + $0x60] sm:$0xff]
          %v755 = vld [vmem:[#allocation2 + $0x68] sm:$0xff]
          %v756 = vld [vmem:[#allocation2 + $0x70] sm:$0xff]
          %v757 = vld [vmem:[#allocation2 + $0x78] sm:$0xff]
          %v758 = vld [vmem:[%s352] sm:$0xff]
          %v759 = vld [vmem:[%s352 + $0x8] sm:$0xff]
          %v760 = vld [vmem:[%s352 + $0x10] sm:$0xff]
          %v761 = vld [vmem:[%s352 + $0x18] sm:$0xff]
          %v762 = vld [vmem:[%s352 + $0x20] sm:$0xff]
          %v763 = vld [vmem:[%s352 + $0x28] sm:$0xff]
          %v764 = vld [vmem:[%s352 + $0x30] sm:$0xff]
          %v765 = vld [vmem:[%s352 + $0x38] sm:$0xff]
          %v766 = vld [vmem:[%s352 + $0x40] sm:$0xff]
          %v767 = vld [vmem:[%s352 + $0x48] sm:$0xff]
          %v768 = vld [vmem:[%s352 + $0x50] sm:$0xff]
          %v769 = vld [vmem:[%s352 + $0x58] sm:$0xff]
          %v770 = vld [vmem:[%s352 + $0x60] sm:$0xff]
          %v771 = vld [vmem:[%s352 + $0x68] sm:$0xff]
          %v772 = vld [vmem:[%s352 + $0x70] sm:$0xff]
          %v773 = vld [vmem:[%s352 + $0x78] sm:$0xff]
          %v774 = vadd.f32 %v742, %v758
          %v775 = vadd.f32 %v743, %v759
          %v776 = vadd.f32 %v744, %v760
          %v777 = vadd.f32 %v745, %v761
          %v778 = vadd.f32 %v746, %v762
          %v779 = vadd.f32 %v747, %v763
          %v780 = vadd.f32 %v748, %v764
          %v781 = vadd.f32 %v749, %v765
          %v782 = vadd.f32 %v750, %v766
          %v783 = vadd.f32 %v751, %v767
          %v784 = vadd.f32 %v752, %v768
          %v785 = vadd.f32 %v753, %v769
          %v786 = vadd.f32 %v754, %v770
          %v787 = vadd.f32 %v755, %v771
          %v788 = vadd.f32 %v756, %v772
          %v789 = vadd.f32 %v757, %v773
          %v790 = vld [vmem:[%s3] sm:$0xff]
          %v791 = vld [vmem:[%s3 + $0x8] sm:$0xff]
          %v792 = vld [vmem:[%s4] sm:$0x1]
          %v794 = vperm.slane %v792, 0
          %v797 = vsel %vm722, %v774, 0
          %v800 = vsel %vm722, %v775, 0
          %v803 = vsel %vm722, %v776, 0
          %v806 = vsel %vm722, %v777, 0
          %v809 = vsel %vm722, %v778, 0
          %v812 = vsel %vm722, %v779, 0
          %v815 = vsel %vm722, %v780, 0
          %v818 = vsel %vm722, %v781, 0
          %v821 = vsel %vm722, %v782, 0
          %v824 = vsel %vm722, %v783, 0
          %v827 = vsel %vm722, %v784, 0
          %v830 = vsel %vm722, %v785, 0
          %v833 = vsel %vm722, %v786, 0
          %v836 = vsel %vm722, %v787, 0
          %v839 = vsel %vm722, %v788, 0
          %v842 = vsel %vm722, %v789, 0
          %844 = vmatpush.msra.mxu0 0.0
          %845 = vmatpush.msra.mxu0 0.0
          %846 = vmatpush.msra.mxu0 0.0
          %847 = vmatpush.msra.mxu0 0.0
          %848 = vmatpush.msra.mxu0 0.0
          %849 = vmatpush.msra.mxu0 0.0
          %850 = vmatpush.msra.mxu0 0.0
          %851 = vmatpush.msra.mxu0 0.0
          %852 = vmatpush.msra.mxu0 0.0
          %853 = vmatpush.msra.mxu0 0.0
          %854 = vmatpush.msra.mxu0 0.0
          %855 = vmatpush.msra.mxu0 0.0
          %856 = vmatpush.msra.mxu0 0.0
          %857 = vmatpush.msra.mxu0 0.0
          %858 = vmatpush.msra.mxu0 %v791
          %859 = vmatpush.msra.mxu0 %v790
          %860 = vmatmul.f32.gmra.mxu0 %v797
          %v861 = vpop.f32.mrf.mxu0
          %v862 = vadd.f32 %v794, %v861
          %863 = vmatmul.f32.gmra.mxu0 %v800
          %v864 = vpop.f32.mrf.mxu0
          %v865 = vadd.f32 %v794, %v864
          %866 = vmatmul.f32.gmra.mxu0 %v803
          %v867 = vpop.f32.mrf.mxu0
          %v868 = vadd.f32 %v794, %v867
          %869 = vmatmul.f32.gmra.mxu0 %v806
          %v870 = vpop.f32.mrf.mxu0
          %v871 = vadd.f32 %v794, %v870
          %872 = vmatmul.f32.gmra.mxu0 %v809
          %v873 = vpop.f32.mrf.mxu0
          %v874 = vadd.f32 %v794, %v873
          %875 = vmatmul.f32.gmra.mxu0 %v812
          %v876 = vpop.f32.mrf.mxu0
          %v877 = vadd.f32 %v794, %v876
          %878 = vmatmul.f32.gmra.mxu0 %v815
          %v879 = vpop.f32.mrf.mxu0
          %v880 = vadd.f32 %v794, %v879
          %881 = vmatmul.f32.gmra.mxu0 %v818
          %v882 = vpop.f32.mrf.mxu0
          %v883 = vadd.f32 %v794, %v882
          %884 = vmatmul.f32.gmra.mxu0 %v821
          %v885 = vpop.f32.mrf.mxu0
          %v886 = vadd.f32 %v794, %v885
          %887 = vmatmul.f32.gmra.mxu0 %v824
          %v888 = vpop.f32.mrf.mxu0
          %v889 = vadd.f32 %v794, %v888
          %890 = vmatmul.f32.gmra.mxu0 %v827
          %v891 = vpop.f32.mrf.mxu0
          %v892 = vadd.f32 %v794, %v891
          %893 = vmatmul.f32.gmra.mxu0 %v830
          %v894 = vpop.f32.mrf.mxu0
          %v895 = vadd.f32 %v794, %v894
          %896 = vmatmul.f32.gmra.mxu0 %v833
          %v897 = vpop.f32.mrf.mxu0
          %v898 = vadd.f32 %v794, %v897
          %899 = vmatmul.f32.gmra.mxu0 %v836
          %v900 = vpop.f32.mrf.mxu0
          %v901 = vadd.f32 %v794, %v900
          %902 = vmatmul.f32.gmra.mxu0 %v839
          %v903 = vpop.f32.mrf.mxu0
          %v904 = vadd.f32 %v794, %v903
          %905 = vmatmul.f32.gmra.mxu0 %v842
          %v906 = vpop.f32.mrf.mxu0
          %v907 = vadd.f32 %v794, %v906
          %908 = vdwg.mxu0
          %v909 = vmax.f32 %v862, 0.0
          %v910 = vmax.f32 %v865, 0.0
          %v911 = vmax.f32 %v868, 0.0
          %v912 = vmax.f32 %v871, 0.0
          %v913 = vmax.f32 %v874, 0.0
          %v914 = vmax.f32 %v877, 0.0
          %v915 = vmax.f32 %v880, 0.0
          %v916 = vmax.f32 %v883, 0.0
          %v917 = vmax.f32 %v886, 0.0
          %v918 = vmax.f32 %v889, 0.0
          %v919 = vmax.f32 %v892, 0.0
          %v920 = vmax.f32 %v895, 0.0
          %v921 = vmax.f32 %v898, 0.0
          %v922 = vmax.f32 %v901, 0.0
          %v923 = vmax.f32 %v904, 0.0
          %v924 = vmax.f32 %v907, 0.0
          %v925 = vld [vmem:[%s5] sm:$0xff]
          %v926 = vld [vmem:[%s5 + $0x8] sm:$0xff]
          %v927 = vld [vmem:[%s5 + $0x10] sm:$0xff]
          %v928 = vld [vmem:[%s5 + $0x18] sm:$0xff]
          %v929 = vld [vmem:[%s6] sm:$0x1]
          %v931 = vperm.slane %v929, 0
          %vm933 = vcmask 261120
          %v935 = vsel %vm933, %v909, 0
          %v938 = vsel %vm933, %v910, 0
          %v941 = vsel %vm933, %v911, 0
          %v944 = vsel %vm933, %v912, 0
          %v947 = vsel %vm933, %v913, 0
          %v950 = vsel %vm933, %v914, 0
          %v953 = vsel %vm933, %v915, 0
          %v956 = vsel %vm933, %v916, 0
          %v959 = vsel %vm933, %v917, 0
          %v962 = vsel %vm933, %v918, 0
          %v965 = vsel %vm933, %v919, 0
          %v968 = vsel %vm933, %v920, 0
          %v971 = vsel %vm933, %v921, 0
          %v974 = vsel %vm933, %v922, 0
          %v977 = vsel %vm933, %v923, 0
          %v980 = vsel %vm933, %v924, 0
          %982 = vmatpush.msra.mxu0 0.0
          %983 = vmatpush.msra.mxu0 0.0
          %984 = vmatpush.msra.mxu0 0.0
          %985 = vmatpush.msra.mxu0 0.0
          %986 = vmatpush.msra.mxu0 0.0
          %987 = vmatpush.msra.mxu0 0.0
          %988 = vmatpush.msra.mxu0 0.0
          %989 = vmatpush.msra.mxu0 0.0
          %990 = vmatpush.msra.mxu0 0.0
          %991 = vmatpush.msra.mxu0 0.0
          %992 = vmatpush.msra.mxu0 0.0
          %993 = vmatpush.msra.mxu0 0.0
          %994 = vmatpush.msra.mxu0 %v928
          %995 = vmatpush.msra.mxu0 %v927
          %996 = vmatpush.msra.mxu0 %v926
          %997 = vmatpush.msra.mxu0 %v925
          %998 = vmatmul.f32.gmra.mxu0 %v935
          %v999 = vpop.f32.mrf.mxu0
          %v1000 = vadd.f32 %v931, %v999
          %1001 = vmatmul.f32.gmra.mxu0 %v938
          %v1002 = vpop.f32.mrf.mxu0
          %v1003 = vadd.f32 %v931, %v1002
          %1004 = vmatmul.f32.gmra.mxu0 %v941
          %v1005 = vpop.f32.mrf.mxu0
          %v1006 = vadd.f32 %v931, %v1005
          %1007 = vmatmul.f32.gmra.mxu0 %v944
          %v1008 = vpop.f32.mrf.mxu0
          %v1009 = vadd.f32 %v931, %v1008
          %1010 = vmatmul.f32.gmra.mxu0 %v947
          %v1011 = vpop.f32.mrf.mxu0
          %v1012 = vadd.f32 %v931, %v1011
          %1013 = vmatmul.f32.gmra.mxu0 %v950
          %v1014 = vpop.f32.mrf.mxu0
          %v1015 = vadd.f32 %v931, %v1014
          %1016 = vmatmul.f32.gmra.mxu0 %v953
          %v1017 = vpop.f32.mrf.mxu0
          %v1018 = vadd.f32 %v931, %v1017
          %1019 = vmatmul.f32.gmra.mxu0 %v956
          %v1020 = vpop.f32.mrf.mxu0
          %v1021 = vadd.f32 %v931, %v1020
          %1022 = vmatmul.f32.gmra.mxu0 %v959
          %v1023 = vpop.f32.mrf.mxu0
          %v1024 = vadd.f32 %v931, %v1023
          %1025 = vmatmul.f32.gmra.mxu0 %v962
          %v1026 = vpop.f32.mrf.mxu0
          %v1027 = vadd.f32 %v931, %v1026
          %1028 = vmatmul.f32.gmra.mxu0 %v965
          %v1029 = vpop.f32.mrf.mxu0
          %v1030 = vadd.f32 %v931, %v1029
          %1031 = vmatmul.f32.gmra.mxu0 %v968
          %v1032 = vpop.f32.mrf.mxu0
          %v1033 = vadd.f32 %v931, %v1032
          %1034 = vmatmul.f32.gmra.mxu0 %v971
          %v1035 = vpop.f32.mrf.mxu0
          %v1036 = vadd.f32 %v931, %v1035
          %1037 = vmatmul.f32.gmra.mxu0 %v974
          %v1038 = vpop.f32.mrf.mxu0
          %v1039 = vadd.f32 %v931, %v1038
          %1040 = vmatmul.f32.gmra.mxu0 %v977
          %v1041 = vpop.f32.mrf.mxu0
          %v1042 = vadd.f32 %v931, %v1041
          %1043 = vmatmul.f32.gmra.mxu0 %v980
          %v1044 = vpop.f32.mrf.mxu0
          %v1045 = vadd.f32 %v931, %v1044
          %1046 = vdwg.mxu0
          %v1047 = vmax.f32 %v1000, 0.0
          %v1048 = vmax.f32 %v1003, 0.0
          %v1049 = vmax.f32 %v1006, 0.0
          %v1050 = vmax.f32 %v1009, 0.0
          %v1051 = vmax.f32 %v1012, 0.0
          %v1052 = vmax.f32 %v1015, 0.0
          %v1053 = vmax.f32 %v1018, 0.0
          %v1054 = vmax.f32 %v1021, 0.0
          %v1055 = vmax.f32 %v1024, 0.0
          %v1056 = vmax.f32 %v1027, 0.0
          %v1057 = vmax.f32 %v1030, 0.0
          %v1058 = vmax.f32 %v1033, 0.0
          %v1059 = vmax.f32 %v1036, 0.0
          %v1060 = vmax.f32 %v1039, 0.0
          %v1061 = vmax.f32 %v1042, 0.0
          %v1062 = vmax.f32 %v1045, 0.0
          %1063 = vst [vmem:[%s329] sm:$0xff] %v1047
          %1064 = vst [vmem:[%s329 + $0x8] sm:$0xff] %v1048
          %1065 = vst [vmem:[%s329 + $0x10] sm:$0xff] %v1049
          %1066 = vst [vmem:[%s329 + $0x18] sm:$0xff] %v1050
          %1067 = vst [vmem:[%s329 + $0x20] sm:$0xff] %v1051
          %1068 = vst [vmem:[%s329 + $0x28] sm:$0xff] %v1052
          %1069 = vst [vmem:[%s329 + $0x30] sm:$0xff] %v1053
          %1070 = vst [vmem:[%s329 + $0x38] sm:$0xff] %v1054
          %1071 = vst [vmem:[%s329 + $0x40] sm:$0xff] %v1055
          %1072 = vst [vmem:[%s329 + $0x48] sm:$0xff] %v1056
          %1073 = vst [vmem:[%s329 + $0x50] sm:$0xff] %v1057
          %1074 = vst [vmem:[%s329 + $0x58] sm:$0xff] %v1058
          %1075 = vst [vmem:[%s329 + $0x60] sm:$0xff] %v1059
          %1076 = vst [vmem:[%s329 + $0x68] sm:$0xff] %v1060
          %1077 = vst [vmem:[%s329 + $0x70] sm:$0xff] %v1061
          %1078 = vst [vmem:[%s329 + $0x78] sm:$0xff] %v1062
        $region56: #{tpu_custom_call.1} parent=47 // pred_fallthru
          _
        %s1079 = sand.u32 %s205, 1
        %s1080 = scalar_lea.sflag [#allocation4], %s1079
        %s1081 = sand.u32 %s205, 1
        %s1082 = smul.addr %s1081, 128
        %s1083 = scalar_lea.vmem [#allocation3], %s1082
        // Predicated region
        $region57: #{tpu_custom_call.1} parent=47 // pred_check
          %p1084 = pneg %p215
        $region58: #{tpu_custom_call.1} parent=47 // pred_check_branch
          %1086 = sbr.rel (%p1084) target = $region60
        $region59: #{tpu_custom_call.1} parent=47 // pred_region
          %s1087 = smul.u32 16, %s25
          %1089 = vsyncadd %s1080, 0
          %s1090 = smul.addr %s1087, 8
          %s1091 = scalar_lea.hbm %s7, %s1090
          %s1092 = sshll.u32 %s1083, 4
          %s1093 = int_to_ptr.vmem [resolvable:$true] %s1092
          %s1094 = sshll.u32 %s1091, 4
          %s1095 = int_to_ptr.hbm [resolvable:$true] %s1094
          %1100 = dma.vmem_to_hbm [thread:$0]  %s1093, 2048, %s1095, %s1080, 128, 128, 8
        $region60: #{tpu_custom_call.1} parent=47 // pred_fallthru
          _
      $region48: #{tpu_custom_call.1} parent=5 // pred_fallthru
        _
      %p1101 = scmp.le.s32.totalorder 2, %s16
      // Predicated region
      $region61: #{tpu_custom_call.1} parent=5 // pred_check
        %p1102 = pneg %p1101
      $region62: #{tpu_custom_call.1} parent=5 // pred_check_branch
        %1104 = sbr.rel (%p1102) target = $region64
      $region63: #{tpu_custom_call.1} parent=5 // pred_region
        %s1105 = ssub.s32 %s16, 2
        // Predicated region
        $region65: #{tpu_custom_call.1} parent=63 // pred_check
          %p1106 = pneg %p221
        $region66: #{tpu_custom_call.1} parent=63 // pred_check_branch
          %1108 = sbr.rel (%p1106) target = $region68
        $region67: #{tpu_custom_call.1} parent=63 // pred_region
          %s1109 = sand.u32 %s206, 1
          %s1110 = scalar_lea.sflag [#allocation4], %s1109
          %s1111 = sand.u32 %s206, 1
          %s1112 = smul.addr %s1111, 128
          %s1113 = scalar_lea.vmem [#allocation3], %s1112
          %1115 = dma.done %s1110, 2048
        $region68: #{tpu_custom_call.1} parent=63 // pred_fallthru
          _
      $region64: #{tpu_custom_call.1} parent=5 // pred_fallthru
        _
    $region6: #{tpu_custom_call.1} parent=1 // loop_footer
      %s20 = sadd.s32 1, %s16
    $region7: #{tpu_custom_call.1} parent=1 // loop_footer_branch
      %15 = sbr.rel target = $region3
    $region8: #{tpu_custom_call.1} parent=1 // loop_exit
      _
    %1116 = vsyncpa [#allocation4], 1
    %s1117 = scalar_lea.sflag [#allocation4], 1
    %1118 = vsyncpa %s1117, 1

</llo_original>
